<compile_context>
chip_gen: v7x
topology: tpu7x:2x2x1
jax: 0.10.0
libtpu: 0.0.40
codegen_flags: <defaults>
</compile_context>

<pallas_src>
import functools

import jax
import jax.numpy as jnp
from jax.experimental import pallas as pl
from jax.experimental.pallas import tpu as pltpu

_LANE = 128
_ROW_ALIGN = 16          # bf16 packs 16 rows per sublane group


def _round_up(x, m):
    return ((x + m - 1) // m) * m


def _vmem_capacity_bytes():
    try:
        return int(pltpu.get_tpu_info().vmem_capacity_bytes)
    except Exception:
        return 64 << 20      # conservative: v7x per-TC VMEM


def _pick_tk(i_pad):
    for cand in (512, 256, 128):
        if cand <= i_pad and i_pad % cand == 0:
            return cand
    return 128               # i_pad is always a multiple of 128


def _output_layer_kernel(x_ref, w_ref, params_ref, res_ref, out_ref, acc_ref,
                         *, eps, h_real, h_pad, matmul_dtype):
    k = pl.program_id(1)

    @pl.when(k == 0)
    def _():
        acc_ref[...] = jnp.zeros_like(acc_ref)

    # MXU: (tm, tk) @ (tk, H_pad) with f32 accumulation.  x is cast to the
    # matmul dtype in-register (no extra wrapper-side HBM conversion pass).
    acc_ref[...] += jnp.dot(x_ref[...].astype(matmul_dtype), w_ref[...],
                            preferred_element_type=jnp.float32)

    @pl.when(k == pl.num_programs(1) - 1)
    def _():
        bias = params_ref[0:1, :]
        gamma = params_ref[1:2, :]
        beta = params_ref[2:3, :]

        h = jnp.maximum(acc_ref[...] + bias, 0.0)              # bias + ReLU
        # TODO(synk): dropout is identity (eval mode); training-mode dropout
        # would use pltpu.prng_seed / pltpu.stateful_bernoulli.
        h = h + res_ref[...].astype(jnp.float32)               # residual add

        # LayerNorm over the REAL feature count.  Padded lanes of h are exactly
        # 0 (zero-padded weight cols / bias / residual), so each of the
        # (h_pad - h_real) padded lanes contributes mean^2 to sum(centered^2);
        # a scalar correction replaces the old per-tile lane mask.
        inv_h = 1.0 / float(h_real)
        mean = jnp.sum(h, axis=-1, keepdims=True) * inv_h
        centered = h - mean
        pad_lanes = float(h_pad - h_real)
        var = (jnp.sum(centered * centered, axis=-1, keepdims=True)
               - pad_lanes * mean * mean) * inv_h
        inv = jax.lax.rsqrt(var + eps)                          # EUP rsqrt
        # Padded gamma/beta are 0 -> padded output lanes are 0 (sliced off).
        out_ref[...] = (centered * inv * gamma + beta).astype(out_ref.dtype)


def prepare_output_layer_params(w, b, gamma, beta, *, matmul_dtype=jnp.bfloat16):
    """Pad/cast the layer parameters ONCE (hoisted out of the per-call path)."""
    I, H = w.shape
    I_pad = _round_up(I, _LANE)
    H_pad = _round_up(H, _LANE)
    w_p = jnp.pad(w, ((0, I_pad - I), (0, H_pad - H))).astype(matmul_dtype)
    # b / gamma / beta merged into a single aligned (8, H_pad) f32 block
    # (rows 0..2 used) -> one invariant DMA instead of three sub-sublane ones.
    params = jnp.zeros((8, H_pad), jnp.float32)
    params = params.at[0, :H].set(b.astype(jnp.float32))
    params = params.at[1, :H].set(gamma.astype(jnp.float32))
    params = params.at[2, :H].set(beta.astype(jnp.float32))
    return {"w": w_p, "params": params, "in_features": I, "out_features": H,
            "matmul_dtype": matmul_dtype}


def output_layer(hidden_states, input_tensor, prepared, *, eps=1e-5,
                 tm=None, out_dtype=None):
    """hidden_states: [B, S, I]; input_tensor: [B, S, H] -> [B, S, H]."""
    B, S, I = hidden_states.shape
    H = input_tensor.shape[-1]
    assert prepared["in_features"] == I and prepared["out_features"] == H
    M = B * S
    out_dtype = out_dtype or input_tensor.dtype
    matmul_dtype = prepared["matmul_dtype"]

    w_p = prepared["w"]
    params = prepared["params"]
    I_pad, H_pad = w_p.shape

    # Only pad feature dims (lane axis) when not already 128-aligned; rows (M)
    # are never padded -- the partial last tile is handled by the pipeline.
    x2 = hidden_states.reshape(M, I)
    if I_pad != I:
        x2 = jnp.pad(x2, ((0, 0), (0, I_pad - I)))
    r2 = input_tensor.reshape(M, H)
    if H_pad != H:
        r2 = jnp.pad(r2, ((0, 0), (0, H_pad - H)))

    x_sz = jnp.dtype(x2.dtype).itemsize
    w_sz = jnp.dtype(w_p.dtype).itemsize
    r_sz = jnp.dtype(r2.dtype).itemsize
    o_sz = jnp.dtype(out_dtype).itemsize

    vmem_cap = _vmem_capacity_bytes()
    budget = int(vmem_cap * 0.85)
    tk = _pick_tk(I_pad)

    def footprint(tm_):
        return (2 * tm_ * tk * x_sz          # x blocks (double-buffered)
                + 2 * tk * H_pad * w_sz      # weight blocks (double-buffered)
                + tm_ * H_pad * 4            # f32 accumulator scratch
                + 2 * tm_ * H_pad * r_sz     # residual blocks
                + 2 * tm_ * H_pad * o_sz     # output blocks
                + 8 * H_pad * 4)             # merged params (single-buffered)

    # Budget-derived row tile (big tiles amortize per-step overhead; halve
    # until the pipeline footprint fits the per-generation VMEM budget).
    if tm is None:
        tm = 512
    tm = _round_up(max(int(tm), _ROW_ALIGN), _ROW_ALIGN)
    tm_eff = min(tm, _round_up(M, _ROW_ALIGN))
    while tm_eff > _ROW_ALIGN and footprint(tm_eff) > budget:
        tm_eff = _round_up(tm_eff // 2, _ROW_ALIGN)

    grid = (pl.cdiv(M, tm_eff), I_pad // tk)

    vmem_limit = min(int(footprint(tm_eff) * 1.3) + (2 << 20),
                     int(vmem_cap * 0.9))
    vmem_limit = max(vmem_limit, 4 << 20)

    kernel = functools.partial(_output_layer_kernel, eps=float(eps),
                               h_real=H, h_pad=H_pad, matmul_dtype=matmul_dtype)

    cost = pl.CostEstimate(
        flops=2 * M * I_pad * H_pad,
        transcendentals=0,
        bytes_accessed=(M * I_pad * x_sz + I_pad * H_pad * w_sz
                        + M * H_pad * (r_sz + o_sz)))

    out = pl.pallas_call(
        kernel,
        out_shape=jax.ShapeDtypeStruct((M, H_pad), out_dtype),
        grid_spec=pltpu.PrefetchScalarGridSpec(
            num_scalar_prefetch=0,
            grid=grid,
            in_specs=[
                pl.BlockSpec((tm_eff, tk), lambda i, k: (i, k)),       # x
                pl.BlockSpec((tk, H_pad), lambda i, k: (k, 0)),        # weight
                pl.BlockSpec((8, H_pad), lambda i, k: (0, 0),
                             pipeline_mode=pl.Buffered(1)),            # b/gamma/beta
                pl.BlockSpec((tm_eff, H_pad), lambda i, k: (i, 0)),    # residual
            ],
            out_specs=pl.BlockSpec((tm_eff, H_pad), lambda i, k: (i, 0)),
            scratch_shapes=[pltpu.VMEM((tm_eff, H_pad), jnp.float32)],
        ),
        compiler_params=pltpu.CompilerParams(
            dimension_semantics=("parallel", "arbitrary"),
            vmem_limit_bytes=vmem_limit),
        cost_estimate=cost,
    )(x2, w_p, params, r2)

    if H_pad != H:
        out = out[:, :H]
    return out.reshape(B, S, H)


if __name__ == "__main__":
    # Small shapes consistent with the module's forward:
    #   hidden_states: [B, S, intermediate_size]; input_tensor: [B, S, hidden_size]
    B, S = 2, 8
    intermediate_size = 64
    hidden_size = 32

    key = jax.random.PRNGKey(0)
    k_x, k_r, k_w, k_b, k_g, k_be = jax.random.split(key, 6)

    hidden_states = jax.random.normal(
        k_x, (B, S, intermediate_size), dtype=jnp.float32)
    input_tensor = jax.random.normal(
        k_r, (B, S, hidden_size), dtype=jnp.float32)

    w = jax.random.normal(
        k_w, (intermediate_size, hidden_size), dtype=jnp.float32) * 0.05
    b = jax.random.normal(k_b, (hidden_size,), dtype=jnp.float32) * 0.05
    gamma = jnp.ones((hidden_size,), dtype=jnp.float32) \
        + 0.01 * jax.random.normal(k_g, (hidden_size,), dtype=jnp.float32)
    beta = 0.01 * jax.random.normal(k_be, (hidden_size,), dtype=jnp.float32)

    prepared = prepare_output_layer_params(w, b, gamma, beta)
    out = output_layer(hidden_states, input_tensor, prepared)
    out = jax.block_until_ready(out)

    # Pure-JAX references.
    def ref(x, r, w, b, g, be, eps=1e-5, mm_dtype=None):
        if mm_dtype is not None:
            x = x.astype(mm_dtype)
            w = w.astype(mm_dtype)
        h = jnp.einsum("bsi,ih->bsh", x, w,
                       preferred_element_type=jnp.float32)
        h = jnp.maximum(h + b, 0.0)
        h = h + r
        mu = jnp.mean(h, axis=-1, keepdims=True)
        var = jnp.mean((h - mu) ** 2, axis=-1, keepdims=True)
        return (h - mu) * jax.lax.rsqrt(var + eps) * g + be

    expected_same_dtype = ref(hidden_states, input_tensor, w, b, gamma, beta,
                              mm_dtype=jnp.bfloat16)
    expected_f32 = ref(hidden_states, input_tensor, w, b, gamma, beta)

    assert out.shape == (B, S, hidden_size)
    assert jnp.allclose(out, expected_same_dtype, atol=1e-3, rtol=1e-3)
    assert jnp.allclose(out, expected_f32, atol=3e-2, rtol=3e-2)
    print("KERNEL_OK")
</pallas_src>

<mosaic_0001>
module attributes {stable_mosaic.version = 11 : i64} {
  func.func @_output_layer_kernel(%arg0: i32, %arg1: i32, %arg2: memref<16x128xf32, #tpu.memory_space<vmem>>, %arg3: memref<128x128xbf16, #tpu.memory_space<vmem>>, %arg4: memref<8x128xf32, #tpu.memory_space<vmem>>, %arg5: memref<16x128xf32, #tpu.memory_space<vmem>>, %arg6: memref<16x128xf32, #tpu.memory_space<vmem>>, %arg7: memref<16x128xf32, #tpu.memory_space<vmem>>) attributes {dimension_semantics = [#tpu.dimension_semantics<parallel>, #tpu.dimension_semantics<arbitrary>], iteration_bounds = array<i64: 1, 1>, scalar_prefetch = 0 : i64, scratch_operands = 1 : i64, tpu.core_type = #tpu.core_type<tc>, window_params = [{transform_indices = @transform_0, window_bounds = array<i64: 16, 128>}, {transform_indices = @transform_1, window_bounds = array<i64: 128, 128>}, {pipeline_mode = #tpu.pipeline_mode<synchronous>, transform_indices = @transform_2, window_bounds = array<i64: 8, 128>}, {transform_indices = @transform_3, window_bounds = array<i64: 16, 128>}, {transform_indices = @transform_4, window_bounds = array<i64: 16, 128>}]} {
    %c0_i32 = arith.constant 0 : i32
    %0 = arith.cmpi eq, %arg1, %c0_i32 : i32
    %1 = arith.extui %0 : i1 to i32
    %c0_i32_0 = arith.constant 0 : i32
    %2 = arith.cmpi ne, %1, %c0_i32_0 : i32
    scf.if %2 {
      %cst_10 = arith.constant 0.000000e+00 : f32
      %13 = vector.broadcast %cst_10 : f32 to vector<16x128xf32>
      %c0_11 = arith.constant 0 : index
      %c0_12 = arith.constant 0 : index
      %14 = vector.load %arg7[%c0_11, %c0_12] : memref<16x128xf32, #tpu.memory_space<vmem>>, vector<16x128xf32>
      tpu.vector_store %arg7[%c0_11, %c0_12], %13 {strides = array<i32>} : memref<16x128xf32, #tpu.memory_space<vmem>>, vector<16x128xf32>,
    } else {
    }
    %c0 = arith.constant 0 : index
    %c0_1 = arith.constant 0 : index
    %3 = vector.load %arg7[%c0, %c0_1] : memref<16x128xf32, #tpu.memory_space<vmem>>, vector<16x128xf32>
    %c0_2 = arith.constant 0 : index
    %c0_3 = arith.constant 0 : index
    %4 = vector.load %arg2[%c0_2, %c0_3] : memref<16x128xf32, #tpu.memory_space<vmem>>, vector<16x128xf32>
    %5 = arith.truncf %4 : vector<16x128xf32> to vector<16x128xbf16>
    %c0_4 = arith.constant 0 : index
    %c0_5 = arith.constant 0 : index
    %6 = vector.load %arg3[%c0_4, %c0_5] : memref<128x128xbf16, #tpu.memory_space<vmem>>, vector<128x128xbf16>
    %cst = arith.constant dense<0.000000e+00> : vector<16x128xf32>
    %7 = tpu.matmul %5, %6, %cst {dimension_numbers = #tpu.dot_dimension_numbers<[1], [0], [0], [1], [0, 0, 1, 1], [], []>} : vector<16x128xbf16>, vector<128x128xbf16>, vector<16x128xf32> -> vector<16x128xf32>
    %8 = arith.addf %3, %7 : vector<16x128xf32>
    %c0_6 = arith.constant 0 : index
    %c0_7 = arith.constant 0 : index
    %9 = vector.load %arg7[%c0_6, %c0_7] : memref<16x128xf32, #tpu.memory_space<vmem>>, vector<16x128xf32>
    tpu.vector_store %arg7[%c0_6, %c0_7], %8 {strides = array<i32>} : memref<16x128xf32, #tpu.memory_space<vmem>>, vector<16x128xf32>,
    %c0_i32_8 = arith.constant 0 : i32
    %10 = arith.cmpi eq, %arg1, %c0_i32_8 : i32
    %11 = arith.extui %10 : i1 to i32
    %c0_i32_9 = arith.constant 0 : i32
    %12 = arith.cmpi ne, %11, %c0_i32_9 : i32
    scf.if %12 {
      %c0_10 = arith.constant 0 : index
      %c0_11 = arith.constant 0 : index
      %13 = vector.load %arg4[%c0_10, %c0_11] : memref<8x128xf32, #tpu.memory_space<vmem>>, vector<1x128xf32>
      %c1 = arith.constant 1 : index
      %c0_12 = arith.constant 0 : index
      %14 = vector.load %arg4[%c1, %c0_12] : memref<8x128xf32, #tpu.memory_space<vmem>>, vector<1x128xf32>
      %c2 = arith.constant 2 : index
      %c0_13 = arith.constant 0 : index
      %15 = vector.load %arg4[%c2, %c0_13] : memref<8x128xf32, #tpu.memory_space<vmem>>, vector<1x128xf32>
      %c0_14 = arith.constant 0 : index
      %c0_15 = arith.constant 0 : index
      %16 = vector.load %arg7[%c0_14, %c0_15] : memref<16x128xf32, #tpu.memory_space<vmem>>, vector<16x128xf32>
      %17 = vector.broadcast %13 : vector<1x128xf32> to vector<16x128xf32>
      %18 = arith.addf %16, %17 : vector<16x128xf32>
      %cst_16 = arith.constant 0.000000e+00 : f32
      %19 = vector.broadcast %cst_16 : f32 to vector<16x128xf32>
      %20 = arith.maximumf %18, %19 : vector<16x128xf32>
      %c0_17 = arith.constant 0 : index
      %c0_18 = arith.constant 0 : index
      %21 = vector.load %arg5[%c0_17, %c0_18] : memref<16x128xf32, #tpu.memory_space<vmem>>, vector<16x128xf32>
      %22 = arith.addf %20, %21 : vector<16x128xf32>
      %cst_19 = arith.constant dense<0.000000e+00> : vector<16xf32>
      %23 = vector.multi_reduction <add>, %22, %cst_19 [1] : vector<16x128xf32> to vector<16xf32>
      %24 = vector.shape_cast %23 : vector<16xf32> to vector<16x1xf32>
      %cst_20 = arith.constant 3.125000e-02 : f32
      %25 = vector.broadcast %cst_20 : f32 to vector<16x1xf32>
      %26 = arith.mulf %24, %25 : vector<16x1xf32>
      %27 = vector.broadcast %26 : vector<16x1xf32> to vector<16x128xf32>
      %28 = arith.subf %22, %27 : vector<16x128xf32>
      %29 = arith.mulf %28, %28 : vector<16x128xf32>
      %cst_21 = arith.constant dense<0.000000e+00> : vector<16xf32>
      %30 = vector.multi_reduction <add>, %29, %cst_21 [1] : vector<16x128xf32> to vector<16xf32>
      %31 = vector.shape_cast %30 : vector<16xf32> to vector<16x1xf32>
      %cst_22 = arith.constant 9.600000e+01 : f32
      %32 = vector.broadcast %cst_22 : f32 to vector<16x1xf32>
      %33 = arith.mulf %32, %26 : vector<16x1xf32>
      %34 = arith.mulf %33, %26 : vector<16x1xf32>
      %35 = arith.subf %31, %34 : vector<16x1xf32>
      %cst_23 = arith.constant 3.125000e-02 : f32
      %36 = vector.broadcast %cst_23 : f32 to vector<16x1xf32>
      %37 = arith.mulf %35, %36 : vector<16x1xf32>
      %cst_24 = arith.constant 9.99999974E-6 : f32
      %38 = vector.broadcast %cst_24 : f32 to vector<16x1xf32>
      %39 = arith.addf %37, %38 : vector<16x1xf32>
      %40 = math.rsqrt %39 : vector<16x1xf32>
      %41 = vector.broadcast %40 : vector<16x1xf32> to vector<16x128xf32>
      %42 = arith.mulf %28, %41 : vector<16x128xf32>
      %43 = vector.broadcast %14 : vector<1x128xf32> to vector<16x128xf32>
      %44 = arith.mulf %42, %43 : vector<16x128xf32>
      %45 = vector.broadcast %15 : vector<1x128xf32> to vector<16x128xf32>
      %46 = arith.addf %44, %45 : vector<16x128xf32>
      %c0_25 = arith.constant 0 : index
      %c0_26 = arith.constant 0 : index
      %47 = vector.load %arg6[%c0_25, %c0_26] : memref<16x128xf32, #tpu.memory_space<vmem>>, vector<16x128xf32>
      tpu.vector_store %arg6[%c0_25, %c0_26], %46 {strides = array<i32>} : memref<16x128xf32, #tpu.memory_space<vmem>>, vector<16x128xf32>,
    } else {
    }
    return
  }
  func.func @transform_0(%arg0: i32, %arg1: i32) -> (i32, i32) {
    %c0_i32 = arith.constant 0 : i32
    return %arg0, %arg1 : i32, i32
  }
  func.func @transform_1(%arg0: i32, %arg1: i32) -> (i32, i32) {
    %c0_i32 = arith.constant 0 : i32
    %c0_i32_0 = arith.constant 0 : i32
    return %arg1, %c0_i32 : i32, i32
  }
  func.func @transform_2(%arg0: i32, %arg1: i32) -> (i32, i32) {
    %c0_i32 = arith.constant 0 : i32
    %c0_i32_0 = arith.constant 0 : i32
    %c0_i32_1 = arith.constant 0 : i32
    return %c0_i32, %c0_i32_0 : i32, i32
  }
  func.func @transform_3(%arg0: i32, %arg1: i32) -> (i32, i32) {
    %c0_i32 = arith.constant 0 : i32
    %c0_i32_0 = arith.constant 0 : i32
    return %arg0, %c0_i32 : i32, i32
  }
  func.func @transform_4(%arg0: i32, %arg1: i32) -> (i32, i32) {
    %c0_i32 = arith.constant 0 : i32
    %c0_i32_0 = arith.constant 0 : i32
    return %arg0, %c0_i32 : i32, i32
  }
}

</mosaic_0001>

<llo_original>
// kernel: tpu_custom_call.1
$region0: #{tpu_custom_call.1}
  #allocation0 [shape = 'u32[]', space=smem, size = 0x4, offset = 0x4, fixed_abs, tag = 'smem constant byte address 0x4 - core index']
  #allocation1 [shape = 'u32[144,128]{1,0:T(1,128)}', space=vmem, size = 0x12000, scoped, tag = 'internal scratch']
  #allocation2 [shape = 'f32[16,128]{1,0:T(8,128)}', space=vmem, size = 0x2000, scoped, tag = 'scratch operand']
  %s0 = inlined_call_operand.hbm [shape: f32[16,128], index: 0, kind: input, shape index: {}]
  %s1 = inlined_call_operand.hbm [shape: bf16[128,128], index: 1, kind: input, shape index: {}]
  %s2 = inlined_call_operand.hbm [shape: f32[8,128], index: 2, kind: input, shape index: {}]
  %s3 = inlined_call_operand.hbm [shape: f32[16,128], index: 3, kind: input, shape index: {}]
  %s4 = inlined_call_operand.hbm [shape: f32[16,128], index: 4, kind: output, shape index: {}]
  %s5 = sld [smem:[#allocation0]]
  $region50: #{tpu_custom_call.1} parent=0
    _
  %s7 = ssub.s32 1, %s5
  %s8 = scalar_select 0, %s7, %s5
  $region1: #{tpu_custom_call.1} parent=0
    #allocation3 [shape = 'u8[8192]{0}', space=vmem, size = 0x2000, scoped, tag = 'input window, operand 0, single buffered']
    #allocation4 [shape = 's32[1]{0}', space=sflag, size = 0x4, scoped, tag = 'scoped memory for tpu_custom_call.1']
    #allocation5 [shape = 's32[1]{0}', space=sflag, size = 0x4, scoped, tag = 'scoped memory for tpu_custom_call.1']
    #allocation6 [shape = 'u8[32768]{0}', space=vmem, size = 0x8000, scoped, tag = 'input window, operand 1, single buffered']
    #allocation7 [shape = 's32[1]{0}', space=sflag, size = 0x4, scoped, tag = 'scoped memory for tpu_custom_call.1']
    #allocation8 [shape = 'u8[4096]{0}', space=vmem, size = 0x1000, scoped, tag = 'input window, operand 2, single buffered']
    #allocation9 [shape = 'u8[8192]{0}', space=vmem, size = 0x2000, scoped, tag = 'input window, operand 3, single buffered']
    #allocation10 [shape = 's32[1]{0}', space=sflag, size = 0x4, scoped, tag = 'scoped memory for tpu_custom_call.1']
    #allocation11 [shape = 'u8[8192]{0}', space=vmem, size = 0x2000, scoped, tag = 'output window, operand 0, single buffered']
    %9 = vsyncpa [#allocation4], 0
    %10 = vsyncpa [#allocation7], 0
    %11 = vsyncpa [#allocation10], 0
    %12 = vsyncpa [#allocation5], 0
    // Predicated region
    $region2: #{tpu_custom_call.1} parent=1 // pred_check
      _
    $region3: #{tpu_custom_call.1} parent=1 // pred_check_branch
      %14 = sbr.rel (0) target = $region5
    $region4: #{tpu_custom_call.1} parent=1 // pred_region
      %s16 = ssub.s32 256, 256
      %17 = vsyncadd [#allocation4], %s16
      %s18 = sshll.u32 [#allocation3], 4
      %s19 = int_to_ptr.vmem [resolvable:$true] %s18
      %24 = dma.hbm_to_vmem [thread:$0]  %s0, 256, %s19, [#allocation4], 128, 128, 8
    $region5: #{tpu_custom_call.1} parent=1 // pred_fallthru
      _
    // Predicated region
    $region6: #{tpu_custom_call.1} parent=1 // pred_check
      _
    $region7: #{tpu_custom_call.1} parent=1 // pred_check_branch
      %26 = sbr.rel (0) target = $region9
    $region8: #{tpu_custom_call.1} parent=1 // pred_region
      %s28 = ssub.s32 1024, 1024
      %29 = vsyncadd [#allocation7], %s28
      %s30 = sshll.u32 [#allocation6], 4
      %s31 = int_to_ptr.vmem [resolvable:$true] %s30
      %36 = dma.hbm_to_vmem [thread:$0]  %s1, 1024, %s31, [#allocation7], 64, 64, 4
    $region9: #{tpu_custom_call.1} parent=1 // pred_fallthru
      _
    // Predicated region
    $region10: #{tpu_custom_call.1} parent=1 // pred_check
      _
    $region11: #{tpu_custom_call.1} parent=1 // pred_check_branch
      %38 = sbr.rel (0) target = $region13
    $region12: #{tpu_custom_call.1} parent=1 // pred_region
      %s40 = ssub.s32 128, 128
      %41 = vsyncadd [#allocation7], %s40
      %s43 = sshll.u32 [#allocation8], 4
      %s44 = int_to_ptr.vmem [resolvable:$true] %s43
      %46 = dma.hbm_to_vmem [thread:$0]  %s2, 128, %s44, [#allocation7]
    $region13: #{tpu_custom_call.1} parent=1 // pred_fallthru
      _
    // Predicated region
    $region14: #{tpu_custom_call.1} parent=1 // pred_check
      _
    $region15: #{tpu_custom_call.1} parent=1 // pred_check_branch
      %48 = sbr.rel (0) target = $region17
    $region16: #{tpu_custom_call.1} parent=1 // pred_region
      %s50 = ssub.s32 256, 256
      %51 = vsyncadd [#allocation10], %s50
      %s52 = sshll.u32 [#allocation9], 4
      %s53 = int_to_ptr.vmem [resolvable:$true] %s52
      %58 = dma.hbm_to_vmem [thread:$0]  %s3, 256, %s53, [#allocation10], 128, 128, 8
    $region17: #{tpu_custom_call.1} parent=1 // pred_fallthru
      _
    // Predicated region
    $region18: #{tpu_custom_call.1} parent=1 // pred_check
      _
    $region19: #{tpu_custom_call.1} parent=1 // pred_check_branch
      %60 = sbr.rel (0) target = $region21
    $region20: #{tpu_custom_call.1} parent=1 // pred_region
      %61 = dma.done [#allocation4], 256
    $region21: #{tpu_custom_call.1} parent=1 // pred_fallthru
      _
    // Predicated region
    $region22: #{tpu_custom_call.1} parent=1 // pred_check
      _
    $region23: #{tpu_custom_call.1} parent=1 // pred_check_branch
      %63 = sbr.rel (0) target = $region25
    $region24: #{tpu_custom_call.1} parent=1 // pred_region
      %64 = dma.done [#allocation7], 1024
    $region25: #{tpu_custom_call.1} parent=1 // pred_fallthru
      _
    // Predicated region
    $region26: #{tpu_custom_call.1} parent=1 // pred_check
      _
    $region27: #{tpu_custom_call.1} parent=1 // pred_check_branch
      %66 = sbr.rel (0) target = $region29
    $region28: #{tpu_custom_call.1} parent=1 // pred_region
      %67 = dma.done [#allocation7], 128
    $region29: #{tpu_custom_call.1} parent=1 // pred_fallthru
      _
    // Predicated region
    $region30: #{tpu_custom_call.1} parent=1 // pred_check
      _
    $region31: #{tpu_custom_call.1} parent=1 // pred_check_branch
      %69 = sbr.rel (0) target = $region33
    $region32: #{tpu_custom_call.1} parent=1 // pred_region
      %70 = dma.done [#allocation10], 256
    $region33: #{tpu_custom_call.1} parent=1 // pred_fallthru
      _
    %p72 = scmp.eq.s32.totalorder 0, 0
    // Predicated region
    $region34: #{tpu_custom_call.1} parent=1 // pred_check
      %p73 = pneg %p72
    $region35: #{tpu_custom_call.1} parent=1 // pred_check_branch
      %75 = sbr.rel (%p73) target = $region37
    $region36: #{tpu_custom_call.1} parent=1 // pred_region
      %76 = vst [vmem:[#allocation2] sm:$0xff] 0.0
      %77 = vst [vmem:[#allocation2 + $0x8] sm:$0xff] 0.0
    $region37: #{tpu_custom_call.1} parent=1 // pred_fallthru
      _
    %v78 = vld [vmem:[#allocation2] sm:$0xff]
    %v79 = vld [vmem:[#allocation2 + $0x8] sm:$0xff]
    %v80 = vld [vmem:[#allocation3] sm:$0xff]
    %v81 = vld [vmem:[#allocation3 + $0x8] sm:$0xff]
    %v82 = vpack.c.bf16 %v81, %v80
    %v83 = vld [vmem:[#allocation6] sm:$0xf]
    %v84 = vld [vmem:[#allocation6 + $0x4] sm:$0xf]
    %v85 = vld [vmem:[#allocation6 + $0x8] sm:$0xf]
    %v86 = vld [vmem:[#allocation6 + $0xc] sm:$0xf]
    %v87 = vld [vmem:[#allocation6 + $0x10] sm:$0xf]
    %v88 = vld [vmem:[#allocation6 + $0x14] sm:$0xf]
    %v89 = vld [vmem:[#allocation6 + $0x18] sm:$0xf]
    %v90 = vld [vmem:[#allocation6 + $0x1c] sm:$0xf]
    %v91 = vld [vmem:[#allocation6 + $0x20] sm:$0xf]
    %v92 = vld [vmem:[#allocation6 + $0x24] sm:$0xf]
    %v93 = vld [vmem:[#allocation6 + $0x28] sm:$0xf]
    %v94 = vld [vmem:[#allocation6 + $0x2c] sm:$0xf]
    %v95 = vld [vmem:[#allocation6 + $0x30] sm:$0xf]
    %v96 = vld [vmem:[#allocation6 + $0x34] sm:$0xf]
    %v97 = vld [vmem:[#allocation6 + $0x38] sm:$0xf]
    %v98 = vld [vmem:[#allocation6 + $0x3c] sm:$0xf]
    %v115 = vunpack.c.l.b16 %v83
    %v116 = vunpack.c.l.b16 %v84
    %v117 = vunpack.c.l.b16 %v85
    %v118 = vunpack.c.l.b16 %v86
    %v119 = vunpack.c.l.b16 %v87
    %v120 = vunpack.c.l.b16 %v88
    %v121 = vunpack.c.l.b16 %v89
    %v122 = vunpack.c.l.b16 %v90
    %v123 = vunpack.c.l.b16 %v91
    %v124 = vunpack.c.l.b16 %v92
    %v125 = vunpack.c.l.b16 %v93
    %v126 = vunpack.c.l.b16 %v94
    %v127 = vunpack.c.l.b16 %v95
    %v128 = vunpack.c.l.b16 %v96
    %v129 = vunpack.c.l.b16 %v97
    %v130 = vunpack.c.l.b16 %v98
    %v131 = vpack.c.b16 %v116, %v115
    %v132 = vpack.c.b16 %v118, %v117
    %v133 = vpack.c.b16 %v120, %v119
    %v134 = vpack.c.b16 %v122, %v121
    %v135 = vpack.c.b16 %v124, %v123
    %v136 = vpack.c.b16 %v126, %v125
    %v137 = vpack.c.b16 %v128, %v127
    %v138 = vpack.c.b16 %v130, %v129
    %147 = vmatprep.subr.bf16.mxu0 0
    %148 = vmatpush1.bf16.msra.mxu0 %v131
    %149 = vmatprep.subr.bf16.mxu0 0
    %150 = vmatpush1.bf16.msra.mxu0 %v132
    %151 = vmatprep.subr.bf16.mxu0 0
    %152 = vmatpush1.bf16.msra.mxu0 %v133
    %153 = vmatprep.subr.bf16.mxu0 0
    %154 = vmatpush1.bf16.msra.mxu0 %v134
    %155 = vmatprep.subr.bf16.mxu0 0
    %156 = vmatpush1.bf16.msra.mxu0 %v135
    %157 = vmatprep.subr.bf16.mxu0 0
    %158 = vmatpush1.bf16.msra.mxu0 %v136
    %159 = vmatprep.subr.bf16.mxu0 0
    %160 = vmatpush1.bf16.msra.mxu0 %v137
    %161 = vmatprep.subr.bf16.mxu0 0
    %162 = vmatpush1.bf16.msra.mxu0 %v138
    %163 = vmatprep.subr.bf16.mxu0 0
    %164 = vmatpush1.bf16.msra.mxu0 0
    %165 = vmatprep.subr.bf16.mxu0 0
    %166 = vmatpush1.bf16.msra.mxu0 0
    %167 = vmatprep.subr.bf16.mxu0 0
    %168 = vmatpush1.bf16.msra.mxu0 0
    %169 = vmatprep.subr.bf16.mxu0 0
    %170 = vmatpush1.bf16.msra.mxu0 0
    %171 = vmatprep.subr.bf16.mxu0 0
    %172 = vmatpush1.bf16.msra.mxu0 0
    %173 = vmatprep.subr.bf16.mxu0 0
    %174 = vmatpush1.bf16.msra.mxu0 0
    %175 = vmatprep.subr.bf16.mxu0 0
    %176 = vmatpush1.bf16.msra.mxu0 0
    %177 = vmatprep.subr.bf16.mxu0 0
    %178 = vmatpush1.bf16.msra.mxu0 0
    %179 = vmatprep.mubr.bf16.mxu0 0
    %180 = vmatmul.mubr.bf16.gmra.mrb[0].mxu0 %v82
    %v181 = vpop.f32.mrb[0].mxu0
    %v182 = vadd.f32 0.0, %v181
    %v183 = vpop.f32.mrb[0].mxu0
    %v184 = vpop.f32.mrb[0].mxu0
    %v185 = vadd.f32 0.0, %v184
    %v186 = vpop.f32.mrb[0].mxu0
    %187 = vdwg.mxu0
    %v188 = vadd.f32 %v78, %v182
    %v189 = vadd.f32 %v79, %v185
    %190 = vst [vmem:[#allocation2] sm:$0xff] %v188
    %191 = vst [vmem:[#allocation2 + $0x8] sm:$0xff] %v189
    // Predicated region
    $region38: #{tpu_custom_call.1} parent=1 // pred_check
      %p192 = pneg %p72
    $region39: #{tpu_custom_call.1} parent=1 // pred_check_branch
      %194 = sbr.rel (%p192) target = $region41
    $region40: #{tpu_custom_call.1} parent=1 // pred_region
      %v195 = vld [vmem:[#allocation8] sm:$0x1]
      %v196 = vld [vmem:[#allocation8 + $0x1] sm:$0x1]
      %v197 = vld [vmem:[#allocation8 + $0x2] sm:$0x1]
      %v198 = vld [vmem:[#allocation2] sm:$0xff]
      %v199 = vld [vmem:[#allocation2 + $0x8] sm:$0xff]
      %v200 = vlaneseq
      %v201 = vshrl.u32 %v200, 7
      %v202 = vsub.s32 0, %v201
      %v203 = vrot.slane %v195, %v202
      %v204 = vadd.f32 %v198, %v203
      %v205 = vadd.f32 %v199, %v203
      %v206 = vmax.f32 %v204, 0.0
      %v207 = vmax.f32 %v205, 0.0
      %v208 = vld [vmem:[#allocation9] sm:$0xff]
      %v209 = vld [vmem:[#allocation9 + $0x8] sm:$0xff]
      %v210 = vadd.f32 %v206, %v208
      %v211 = vadd.f32 %v207, %v209
      %212 = vadd.xlane.f32.xlu0 %v210
      %v213 = vpop.xlane.xlu0 %212
      %214 = vadd.xlane.f32.xlu0 %v211
      %v215 = vpop.xlane.xlu0 %214
      %v216 = vmul.f32 %v213, 0.03125
      %v217 = vmul.f32 %v215, 0.03125
      %v218 = vsub.f32 %v210, %v216
      %v219 = vsub.f32 %v211, %v217
      %v220 = vmul.f32 %v218, %v218
      %v221 = vmul.f32 %v219, %v219
      %222 = vadd.xlane.f32.xlu0 %v220
      %v223 = vpop.xlane.xlu0 %222
      %224 = vadd.xlane.f32.xlu0 %v221
      %v225 = vpop.xlane.xlu0 %224
      %v226 = vmul.f32 %v216, 96.0
      %v227 = vmul.f32 %v217, 96.0
      %v228 = vmul.f32 %v226, %v216
      %v229 = vmul.f32 %v227, %v217
      %v230 = vsub.f32 %v223, %v228
      %v231 = vsub.f32 %v225, %v229
      %v232 = vmul.f32 %v230, 0.03125
      %v233 = vmul.f32 %v231, 0.03125
      %v234 = vadd.f32 %v232, 1e-05
      %v235 = vadd.f32 %v233, 1e-05
      %v236 = vrsqrt.pop %v234
      %v237 = vrsqrt.pop %v235
      %v238 = vmul.f32 %v218, %v236
      %v239 = vmul.f32 %v219, %v237
      %v240 = vlaneseq
      %v241 = vshrl.u32 %v240, 7
      %v242 = vsub.s32 0, %v241
      %v243 = vrot.slane %v196, %v242
      %v244 = vmul.f32 %v238, %v243
      %v245 = vmul.f32 %v239, %v243
      %v246 = vlaneseq
      %v247 = vshrl.u32 %v246, 7
      %v248 = vsub.s32 0, %v247
      %v249 = vrot.slane %v197, %v248
      %v250 = vadd.f32 %v244, %v249
      %v251 = vadd.f32 %v245, %v249
      %252 = vst [vmem:[#allocation11] sm:$0xff] %v250
      %253 = vst [vmem:[#allocation11 + $0x8] sm:$0xff] %v251
    $region41: #{tpu_custom_call.1} parent=1 // pred_fallthru
      _
    // Predicated region
    $region42: #{tpu_custom_call.1} parent=1 // pred_check
      _
    $region43: #{tpu_custom_call.1} parent=1 // pred_check_branch
      %255 = sbr.rel (0) target = $region45
    $region44: #{tpu_custom_call.1} parent=1 // pred_region
      %s257 = ssub.s32 256, 256
      %258 = vsyncadd [#allocation5], %s257
      %s259 = sshll.u32 [#allocation11], 4
      %s260 = int_to_ptr.vmem [resolvable:$true] %s259
      %265 = dma.vmem_to_hbm [thread:$0]  %s260, 256, %s4, [#allocation5], 128, 128, 8
    $region45: #{tpu_custom_call.1} parent=1 // pred_fallthru
      _
    // Predicated region
    $region46: #{tpu_custom_call.1} parent=1 // pred_check
      _
    $region47: #{tpu_custom_call.1} parent=1 // pred_check_branch
      %267 = sbr.rel (0) target = $region49
    $region48: #{tpu_custom_call.1} parent=1 // pred_region
      %268 = dma.done [#allocation5], 256
    $region49: #{tpu_custom_call.1} parent=1 // pred_fallthru
      _
    %269 = vsyncpa [#allocation4], 1
    %270 = vsyncpa [#allocation7], 1
    %271 = vsyncpa [#allocation10], 1
    %272 = vsyncpa [#allocation5], 1

</llo_original>
